<compile_context>
chip_gen: v6e
topology: v6e:2x2x1
jax: 0.10.0
libtpu: 0.0.40
codegen_flags: <defaults>
</compile_context>

<pallas_src>
import functools

import jax
import jax.numpy as jnp
from jax.experimental import pallas as pl
from jax.experimental.pallas import tpu as pltpu


# ---------------------------------------------------------------------------
# entmax-1.5 (exact, sort-based threshold).
# TODO(synk): the descending sort / threshold search has no clean Pallas TPU
# equivalent at these tiny sizes, so entmax15 stays in plain JAX glue.
def entmax15(z, axis=-1):
    z = jnp.moveaxis(z, axis, -1)
    z = (z - jnp.max(z, axis=-1, keepdims=True)) / 2.0
    z_srt = -jnp.sort(-z, axis=-1)                       # descending
    kk = z.shape[-1]
    rho = jnp.arange(1, kk + 1, dtype=z.dtype)
    mean = jnp.cumsum(z_srt, axis=-1) / rho
    mean_sq = jnp.cumsum(z_srt * z_srt, axis=-1) / rho
    ss = rho * (mean_sq - mean * mean)
    delta = jnp.maximum((1.0 - ss) / rho, 0.0)
    tau = mean - jnp.sqrt(delta)
    support = jnp.sum((tau <= z_srt).astype(jnp.int32), axis=-1, keepdims=True)
    tau_star = jnp.take_along_axis(tau, support - 1, axis=-1)
    p = jnp.maximum(z - tau_star, 0.0) ** 2
    return jnp.moveaxis(p, -1, axis)


# ---------------------------------------------------------------------------
# Hot kernel: fused forward+backward grouped temporal conv with the dynamic
# entmax windows, fused with the mean over the fold_div axis -- expressed as
# banded MXU matmuls (windows, 1/n_div and boundary zeros folded into `band`).
def _shift_conv_kernel(band_ref, xp_ref, o_ref, *, fold):
    # band_ref: (1, 2*t, Kd)          bf16, Kd = n_div * t_pad
    # xp_ref  : (1, fold, Kd, s_blk)  bf16
    # o_ref   : (1, fold, 2*t, s_blk) f32 or bf16
    band = band_ref[0]                                    # (2*t, Kd)
    for fd in range(fold):                                # tiny static unroll
        res = jnp.dot(band, xp_ref[0, fd],                # (Kd, s_blk)
                      preferred_element_type=jnp.float32)  # f32 accumulation
        o_ref[0, fd] = res.astype(o_ref.dtype)


def shift_conv(band, xp, *, fold, out_dtype):
    b, _, Kd, S = xp.shape
    M = band.shape[1]                                      # 2 * t

    # Lane-tile S: largest S-divisor whose double-buffered working set stays
    # comfortably below the 32 MiB scoped-VMEM default on every generation
    # (blocks are 100s of KB at realistic sizes -> this usually selects full S
    # or >=2048 lanes: amortizes the ~0.35us per-grid-step overhead, big DMAs).
    out_isz = jnp.dtype(out_dtype).itemsize
    def footprint(sb):
        return 2 * (fold * Kd * sb * 2          # xp block (bf16), double-buffered
                    + fold * M * sb * out_isz   # out block
                    + M * Kd * 2)               # band block
    cands = sorted({m for m in (4096, 2048, 1024, 512, 256, 128) if S % m == 0}
                   | {S}, reverse=True)
    budget = 24 * 1024 * 1024                   # headroom under scoped default
    s_blk = cands[-1]
    for cand in cands:
        if footprint(cand) <= budget:
            s_blk = cand
            break
    # v7x has 2 TensorCores: keep >= 2 grid steps when S can still be split.
    if b * (S // s_blk) < 2:
        smaller = [cnd for cnd in cands if cnd < s_blk]
        if smaller:
            s_blk = smaller[0]

    return pl.pallas_call(
        functools.partial(_shift_conv_kernel, fold=fold),
        out_shape=jax.ShapeDtypeStruct((b, fold, M, S), out_dtype),
        grid=(b, S // s_blk),
        in_specs=[
            pl.BlockSpec((1, M, Kd), lambda i, j: (i, 0, 0)),
            pl.BlockSpec((1, fold, Kd, s_blk), lambda i, j: (i, 0, 0, j)),
        ],
        out_specs=pl.BlockSpec((1, fold, M, s_blk), lambda i, j: (i, 0, 0, j)),
        compiler_params=pltpu.CompilerParams(
            dimension_semantics=("parallel", "parallel")),
    )(band, xp)


# ---------------------------------------------------------------------------
# PeriodicShift forward (glue = reshapes / entmax / tiny Linears; kernel = hot path)
def periodic_shift_forward(x, batch_size, frame_len, params, cfg, use_pallas=True):
    B, H, N, c = x.shape
    b, t = batch_size, frame_len
    k = B // (b * t)
    F = cfg["n_div"]; fold = cfg["fold"]; T = cfg["t_span"]
    t_shift = cfg["t_shift"]; t_cut = cfg["t_cut"]; dim = cfg["dim"]
    S = k * H * N
    inv_f = 1.0 / F

    x6 = x.reshape(b, t, k, H, N, c)

    # ---- attention pooling + dynamic window generation (tiny: a few small
    # dots around entmax15 sorts).  Left to XLA on purpose: two extra
    # pallas_call launches here cost more than they save (perf review).
    x_ = jnp.transpose(x6, (0, 2, 4, 1, 3, 5)).reshape(b, k * N * t, dim)
    wins = []
    for name in ("forward", "backward"):
        pool_w, pool_b, win_w, win_b = params[name]
        attn = x_ @ pool_w + pool_b                       # (b, L, 1), bias kept
        p = entmax15(attn, axis=1)
        pooled = jnp.sum(p * x_, axis=1)                  # (b, dim)
        wl = pooled @ win_w.T + win_b                     # (b, T*F)
        wins.append(entmax15(wl.reshape(b, T, F).transpose(0, 2, 1), axis=-1))
    win = jnp.stack(wins, axis=1)                         # (b, 2, F, T) f32

    # ---- banded weight matrices: taps, 1/F fold-mean and boundary zeros.
    # forward tap i at output time tau reads x[tau + i - t_shift];
    # backward tap i at output time tau reads x[tau + t_cut + i];
    # out-of-range reads are zero (out-of-range one_hot -> zero band column,
    # and the [t, t_pad) rows of xp are zero padding).
    t_pad = -(-t // 8) * 8
    if (F * t_pad) % 16:                                  # keep bf16 tiles clean
        t_pad = -(-t // 16) * 16
    Kd = F * t_pad
    bases = jnp.array([-t_shift, t_cut], jnp.int32)
    col = (bases[:, None, None] + jnp.arange(t)[None, :, None]
           + jnp.arange(T)[None, None, :])                # (2, t, T)
    onehot = jax.nn.one_hot(col, t_pad, dtype=jnp.float32)
    band = jnp.einsum('bdfi,dtip->bdtfp', win, onehot) * inv_f   # (b,2,t,F,t_pad)
    band = band.reshape(b, 2 * t, Kd).astype(jnp.bfloat16)

    # ---- hot-path input: (b, fold, F*t_pad, S) bf16, lanes = S (lane dense);
    # channel ch = fold_idx*F + f, no 2*t_shift time padding.
    xp = jnp.transpose(x6.astype(jnp.bfloat16), (0, 5, 1, 2, 3, 4)).reshape(b, c, t, S)
    xp = jnp.pad(xp, ((0, 0), (0, 0), (0, t_pad - t), (0, 0)))
    xp = xp.reshape(b, fold, Kd, S)

    out_dtype = jnp.bfloat16 if x.dtype == jnp.bfloat16 else jnp.float32

    if use_pallas:
        out = shift_conv(band, xp, fold=fold, out_dtype=out_dtype)  # (b, fold, 2t, S)
    else:
        # Independent pure-JAX tap-by-tap reference (same bf16 quantization of
        # x and of the per-tap weights as the kernel path).
        xf = x6.astype(jnp.bfloat16).astype(jnp.float32).reshape(b, t, k, H, N, fold, F)
        acc = jnp.zeros((b, 2, t, k, H, N, fold), jnp.float32)
        for d, base in enumerate((-t_shift, t_cut)):
            for i in range(T):
                sh = base + i                             # source time = tau + sh
                lo, hi = max(0, -sh), min(t, t - sh)
                if lo >= hi:
                    continue
                src = xf[:, lo + sh: hi + sh]
                shifted = jnp.pad(src, ((0, 0), (lo, t - hi), (0, 0), (0, 0),
                                        (0, 0), (0, 0), (0, 0)))
                wv = (win[:, d, :, i] * inv_f).astype(jnp.bfloat16).astype(jnp.float32)
                acc = acc.at[:, d].add(jnp.einsum('bf,btkhnmf->btkhnm', wv, shifted))
        out = jnp.transpose(acc, (0, 6, 1, 2, 3, 4, 5)).reshape(b, fold, 2 * t, S)
        out = out.astype(out_dtype)

    # ---- reassemble: channels [0, fold) <- forward, [fold, 2*fold) <- backward,
    # remaining channels pass through unchanged (as in the original module).
    out = out.reshape(b, fold, 2, t, k, H, N)
    out = jnp.transpose(out, (0, 3, 4, 5, 6, 2, 1)).reshape(b, t, k, H, N, 2 * fold)
    res = jnp.concatenate([out.astype(x.dtype), x6[..., 2 * fold:]], axis=-1)
    return res.reshape(B, H, N, c)


# ---------------------------------------------------------------------------
if __name__ == "__main__":
    # module config (small but structurally faithful)
    dim, num_heads, n_div, t_shift, t_span = 32, 4, 4, 4, 3
    c = dim // num_heads                 # 8
    fold = c // n_div                    # 2
    t_cut = t_shift + 1 - t_span         # 2
    assert t_span <= t_shift + 1
    cfg = dict(dim=dim, num_heads=num_heads, n_div=n_div, fold=fold,
               t_shift=t_shift, t_span=t_span, t_cut=t_cut)

    # input: x is (B, num_heads, N, c) with B = batch_size * frame_len * k
    batch_size, frame_len, k_windows, N = 2, 8, 2, 16
    B = batch_size * frame_len * k_windows      # 32

    key = jax.random.PRNGKey(0)
    k_x, k1, k2, k3, k4, k5, k6, k7, k8 = jax.random.split(key, 9)
    x = jax.random.normal(k_x, (B, num_heads, N, c), dtype=jnp.float32)

    def linear_params(kw, kb, out_f, in_f):
        w = jax.random.normal(kw, (out_f, in_f), jnp.float32) / jnp.sqrt(float(in_f))
        bias = jax.random.normal(kb, (out_f,), jnp.float32) * 0.01
        return w, bias

    w_fp, b_fp = linear_params(k1, k2, 1, dim)                  # forward_pooling
    w_bp, b_bp = linear_params(k3, k4, 1, dim)                  # backward_pooling
    w_fw, b_fw = linear_params(k5, k6, t_span * n_div, dim)     # forward_window_gen
    w_bw, b_bw = linear_params(k7, k8, t_span * n_div, dim)     # backward_window_gen

    params = {
        # (pool_w (dim,1), pool_bias (1,), window_w (T*F,dim), window_b (T*F,))
        "forward":  (w_fp.T, b_fp, w_fw, b_fw),
        "backward": (w_bp.T, b_bp, w_bw, b_bw),
    }

    run = jax.jit(functools.partial(periodic_shift_forward,
                                    batch_size=batch_size, frame_len=frame_len,
                                    params=params, cfg=cfg, use_pallas=True))
    out = jax.block_until_ready(run(x))

    run_ref = jax.jit(functools.partial(periodic_shift_forward,
                                        batch_size=batch_size, frame_len=frame_len,
                                        params=params, cfg=cfg, use_pallas=False))
    ref = jax.block_until_ready(run_ref(x))

    assert out.shape == x.shape and out.dtype == x.dtype
    err = float(jnp.max(jnp.abs(out - ref)))
    assert jnp.allclose(out, ref, atol=1e-3, rtol=1e-3), err
    print("KERNEL_OK")
</pallas_src>

<mosaic_0001>
module attributes {stable_mosaic.version = 11 : i64} {
  func.func @_shift_conv_kernel(%arg0: i32, %arg1: i32, %arg2: memref<1x16x32xbf16, #tpu.memory_space<vmem>>, %arg3: memref<1x2x32x128xbf16, #tpu.memory_space<vmem>>, %arg4: memref<1x2x16x128xf32, #tpu.memory_space<vmem>>) attributes {dimension_semantics = [#tpu.dimension_semantics<parallel>, #tpu.dimension_semantics<parallel>], iteration_bounds = array<i64: 2, 1>, scalar_prefetch = 0 : i64, scratch_operands = 0 : i64, tpu.core_type = #tpu.core_type<tc>, window_params = [{transform_indices = @transform_0, window_bounds = array<i64: 1, 16, 32>}, {transform_indices = @transform_1, window_bounds = array<i64: 1, 2, 32, 128>}, {transform_indices = @transform_2, window_bounds = array<i64: 1, 2, 16, 128>}]} {
    %c0 = arith.constant 0 : index
    %c0_0 = arith.constant 0 : index
    %c0_1 = arith.constant 0 : index
    %0 = vector.load %arg2[%c0, %c0_0, %c0_1] : memref<1x16x32xbf16, #tpu.memory_space<vmem>>, vector<1x16x32xbf16>
    %1 = vector.shape_cast %0 : vector<1x16x32xbf16> to vector<16x32xbf16>
    %c0_2 = arith.constant 0 : index
    %c0_3 = arith.constant 0 : index
    %c0_4 = arith.constant 0 : index
    %c0_5 = arith.constant 0 : index
    %2 = vector.load %arg3[%c0_2, %c0_3, %c0_4, %c0_5] : memref<1x2x32x128xbf16, #tpu.memory_space<vmem>>, vector<1x1x32x128xbf16>
    %3 = vector.shape_cast %2 : vector<1x1x32x128xbf16> to vector<32x128xbf16>
    %cst = arith.constant dense<0.000000e+00> : vector<16x128xf32>
    %4 = tpu.matmul %1, %3, %cst {dimension_numbers = #tpu.dot_dimension_numbers<[1], [0], [0], [1], [0, 0, 1, 1], [], []>} : vector<16x32xbf16>, vector<32x128xbf16>, vector<16x128xf32> -> vector<16x128xf32>
    %c0_6 = arith.constant 0 : index
    %c0_7 = arith.constant 0 : index
    %c0_8 = arith.constant 0 : index
    %c0_9 = arith.constant 0 : index
    %5 = vector.load %arg4[%c0_6, %c0_7, %c0_8, %c0_9] : memref<1x2x16x128xf32, #tpu.memory_space<vmem>>, vector<1x1x16x128xf32>
    %6 = vector.shape_cast %5 : vector<1x1x16x128xf32> to vector<16x128xf32>
    %7 = vector.shape_cast %4 : vector<16x128xf32> to vector<1x1x16x128xf32>
    tpu.vector_store %arg4[%c0_6, %c0_7, %c0_8, %c0_9], %7 {strides = array<i32>} : memref<1x2x16x128xf32, #tpu.memory_space<vmem>>, vector<1x1x16x128xf32>,
    %c0_10 = arith.constant 0 : index
    %c1 = arith.constant 1 : index
    %c0_11 = arith.constant 0 : index
    %c0_12 = arith.constant 0 : index
    %8 = vector.load %arg3[%c0_10, %c1, %c0_11, %c0_12] : memref<1x2x32x128xbf16, #tpu.memory_space<vmem>>, vector<1x1x32x128xbf16>
    %9 = vector.shape_cast %8 : vector<1x1x32x128xbf16> to vector<32x128xbf16>
    %cst_13 = arith.constant dense<0.000000e+00> : vector<16x128xf32>
    %10 = tpu.matmul %1, %9, %cst_13 {dimension_numbers = #tpu.dot_dimension_numbers<[1], [0], [0], [1], [0, 0, 1, 1], [], []>} : vector<16x32xbf16>, vector<32x128xbf16>, vector<16x128xf32> -> vector<16x128xf32>
    %c0_14 = arith.constant 0 : index
    %c1_15 = arith.constant 1 : index
    %c0_16 = arith.constant 0 : index
    %c0_17 = arith.constant 0 : index
    %11 = vector.load %arg4[%c0_14, %c1_15, %c0_16, %c0_17] : memref<1x2x16x128xf32, #tpu.memory_space<vmem>>, vector<1x1x16x128xf32>
    %12 = vector.shape_cast %11 : vector<1x1x16x128xf32> to vector<16x128xf32>
    %13 = vector.shape_cast %10 : vector<16x128xf32> to vector<1x1x16x128xf32>
    tpu.vector_store %arg4[%c0_14, %c1_15, %c0_16, %c0_17], %13 {strides = array<i32>} : memref<1x2x16x128xf32, #tpu.memory_space<vmem>>, vector<1x1x16x128xf32>,
    return
  }
  func.func @transform_0(%arg0: i32, %arg1: i32) -> (i32, i32, i32) {
    %c0_i32 = arith.constant 0 : i32
    %c0_i32_0 = arith.constant 0 : i32
    %c0_i32_1 = arith.constant 0 : i32
    return %arg0, %c0_i32, %c0_i32_0 : i32, i32, i32
  }
  func.func @transform_1(%arg0: i32, %arg1: i32) -> (i32, i32, i32, i32) {
    %c0_i32 = arith.constant 0 : i32
    %c0_i32_0 = arith.constant 0 : i32
    %c0_i32_1 = arith.constant 0 : i32
    return %arg0, %c0_i32, %c0_i32_0, %arg1 : i32, i32, i32, i32
  }
  func.func @transform_2(%arg0: i32, %arg1: i32) -> (i32, i32, i32, i32) {
    %c0_i32 = arith.constant 0 : i32
    %c0_i32_0 = arith.constant 0 : i32
    %c0_i32_1 = arith.constant 0 : i32
    return %arg0, %c0_i32, %c0_i32_0, %arg1 : i32, i32, i32, i32
  }
}

</mosaic_0001>

<llo_original>
// kernel: mul.35
$region0: #{mul.35}
  #allocation0 [shape = 's32[1]{0}', space=sflag, size = 0x4, scoped, tag = 'scoped memory for mul.35']
  %s0 = inlined_call_operand.vmem [shape: f32[2,1,256], index: 0, kind: input, shape index: {}, may-alias: {0,1}]
  %s1 = inlined_call_operand.vmem [shape: f32[2,1,256], index: 1, kind: input, shape index: {}, may-alias: {0,1}]
  %s2 = inlined_call_operand.vmem [shape: f32[2,1,256], index: 2, kind: output, shape index: {}]
  %v3 = vld [vmem:[%s0] sm:$0x1]
  %v4 = vld [vmem:[%s1] sm:$0x1]
  %5 = xla_tuple %v3, %v4
  %6 = xla_tuple %5
  %v7 = vmul.f32 %v3, %v4
  %8 = xla_tuple %v7
  %9 = vst [vmem:[%s2] sm:$0x1] %v7
  %s10 = scalar_lea.vmem %s0, 2
  %v11 = vld [vmem:[%s10] sm:$0x1]
  %s12 = scalar_lea.vmem %s1, 2
  %v13 = vld [vmem:[%s12] sm:$0x1]
  %14 = xla_tuple %v11, %v13
  %15 = xla_tuple %14
  %v16 = vmul.f32 %v11, %v13
  %17 = xla_tuple %v16
  %s18 = scalar_lea.vmem %s2, 2
  %19 = vst [vmem:[%s18] sm:$0x1] %v16
  %s20 = scalar_lea.vmem %s0, 1
  %v21 = vld [vmem:[%s20] sm:$0x1]
  %s22 = scalar_lea.vmem %s1, 1
  %v23 = vld [vmem:[%s22] sm:$0x1]
  %24 = xla_tuple %v21, %v23
  %25 = xla_tuple %24
  %v26 = vmul.f32 %v21, %v23
  %27 = xla_tuple %v26
  %s28 = scalar_lea.vmem %s2, 1
  %29 = vst [vmem:[%s28] sm:$0x1] %v26
  %s30 = scalar_lea.vmem %s0, 3
  %v31 = vld [vmem:[%s30] sm:$0x1]
  %s32 = scalar_lea.vmem %s1, 3
  %v33 = vld [vmem:[%s32] sm:$0x1]
  %34 = xla_tuple %v31, %v33
  %35 = xla_tuple %34
  %v36 = vmul.f32 %v31, %v33
  %37 = xla_tuple %v36
  %s38 = scalar_lea.vmem %s2, 3
  %39 = vst [vmem:[%s38] sm:$0x1] %v36

// kernel: periodic_shift_forward.1
$region0: #{periodic_shift_forward.1}
  #allocation0 [shape = 'u32[]', space=smem, size = 0x4, offset = 0x4, fixed_abs, tag = 'smem constant byte address 0x4 - core index']
  #allocation1 [shape = 'u32[144,128]{1,0:T(1,128)}', space=vmem, size = 0x12000, scoped, tag = 'internal scratch']
  %s0 = inlined_call_operand.vmem [shape: bf16[2,16,32], index: 0, kind: input, shape index: {}]
  %s1 = inlined_call_operand.vmem [shape: bf16[2,2,32,128], index: 1, kind: input, shape index: {}]
  %s2 = inlined_call_operand.vmem [shape: f32[2,2,16,128], index: 2, kind: output, shape index: {}]
  %s3 = sld [smem:[#allocation0]]
  $region41: #{periodic_shift_forward.1} parent=0
    _
  %s5 = ssub.s32 1, %s3
  %s6 = scalar_select 0, %s5, %s3
  loop: start=0, step=1, limit=4
  $region2: #{periodic_shift_forward.1} parent=0 // loop_pre_header
    _
  $region3: #{periodic_shift_forward.1} parent=0 // loop_header
    %s8 = sphi 0, %s12
    %p9 = scmp.ge.s32.totalorder %s8, 4
    %s15 = sphi 0, %s27
    %s16 = sphi 0, %s23
    %s17 = sphi 0, %s15
    %s18 = sphi 0, %s16
    %s19 = sphi 0, %s17
    %s20 = sphi 0, %s18
    %s30 = sphi 0, %s32
    %s33 = sphi 0, %s30
    %s34 = sphi 0, %s33
    %s50 = sphi 0, %s34
    %s58 = sphi 0, %s60
    %s61 = sphi 0, %s58
    %s62 = sphi 0, %s61
    %s78 = sphi 0, %s62
    %s86 = sphi 0, %s88
    %s89 = sphi 0, %s86
    %s90 = sphi 0, %s89
    %s106 = sphi 0, %s90
  $region4: #{periodic_shift_forward.1} parent=0 // loop_header_branch
    %11 = sbr.rel (%p9) target = $region8
  $region5: #{periodic_shift_forward.1} parent=0 // loop_body
    %s13 = ssub.s32 %s8, 1
    %s14 = ssub.s32 %s8, 2
    %s21 = sadd.s32 1, %s16
    %p22 = scmp.ge.s32.totalorder %s21, 1
    %s23 = scalar_select %p22, 0, %s21
    %s24 = sadd.s32 1, %s15
    %s25 = scalar_select %p22, %s24, %s15
    %p26 = scmp.ge.s32.totalorder %s25, 2
    %s27 = scalar_select %p26, 0, %s25
    %s28 = ssub.s32 %s15, %s27
    %p29 = scmp.eq.s32.totalorder %s28, 0
    %s31 = sadd.s32 %s30, 1
    %s32 = scalar_select %p29, %s30, %s31
    %p35 = pneg %p29
    %p36 = scmp.eq.s32.totalorder %s8, 1
    %p37 = por %p35, %p36
    %p38 = scmp.ne.s32.totalorder %s30, %s33
    %p39 = scmp.eq.s32.totalorder %s8, 0
    %p40 = por %p38, %p39
    %p41 = scmp.ne.s32.totalorder %s30, %s33
    %p42 = scmp.eq.s32.totalorder %s13, 1
    %p43 = por %p41, %p42
    %p44 = scmp.ne.s32.totalorder %s33, %s34
    %p45 = scmp.eq.s32.totalorder %s13, 0
    %p46 = por %p44, %p45
    %p47 = scmp.ne.s32.totalorder %s33, %s34
    %p48 = scmp.eq.s32.totalorder %s14, 1
    %p49 = por %p47, %p48
    %p51 = scmp.ne.s32.totalorder %s34, %s50
    %p52 = scmp.eq.s32.totalorder %s14, 0
    %p53 = por %p51, %p52
    %s54 = ssub.s32 %s15, %s27
    %s55 = ssub.s32 %s16, %s23
    %s56 = sor.u32 %s54, %s55
    %p57 = scmp.eq.s32.totalorder %s56, 0
    %s59 = sadd.s32 %s58, 1
    %s60 = scalar_select %p57, %s58, %s59
    %p63 = pneg %p57
    %p64 = scmp.eq.s32.totalorder %s8, 1
    %p65 = por %p63, %p64
    %p66 = scmp.ne.s32.totalorder %s58, %s61
    %p67 = scmp.eq.s32.totalorder %s8, 0
    %p68 = por %p66, %p67
    %p69 = scmp.ne.s32.totalorder %s58, %s61
    %p70 = scmp.eq.s32.totalorder %s13, 1
    %p71 = por %p69, %p70
    %p72 = scmp.ne.s32.totalorder %s61, %s62
    %p73 = scmp.eq.s32.totalorder %s13, 0
    %p74 = por %p72, %p73
    %p75 = scmp.ne.s32.totalorder %s61, %s62
    %p76 = scmp.eq.s32.totalorder %s14, 1
    %p77 = por %p75, %p76
    %p79 = scmp.ne.s32.totalorder %s62, %s78
    %p80 = scmp.eq.s32.totalorder %s14, 0
    %p81 = por %p79, %p80
    %s82 = ssub.s32 %s15, %s27
    %s83 = ssub.s32 %s16, %s23
    %s84 = sor.u32 %s82, %s83
    %p85 = scmp.eq.s32.totalorder %s84, 0
    %s87 = sadd.s32 %s86, 1
    %s88 = scalar_select %p85, %s86, %s87
    %p91 = pneg %p85
    %p92 = scmp.eq.s32.totalorder %s8, 1
    %p93 = por %p91, %p92
    %p94 = scmp.ne.s32.totalorder %s86, %s89
    %p95 = scmp.eq.s32.totalorder %s8, 0
    %p96 = por %p94, %p95
    %p97 = scmp.ne.s32.totalorder %s86, %s89
    %p98 = scmp.eq.s32.totalorder %s13, 1
    %p99 = por %p97, %p98
    %p100 = scmp.ne.s32.totalorder %s89, %s90
    %p101 = scmp.eq.s32.totalorder %s13, 0
    %p102 = por %p100, %p101
    %p103 = scmp.ne.s32.totalorder %s89, %s90
    %p104 = scmp.eq.s32.totalorder %s14, 1
    %p105 = por %p103, %p104
    %p107 = scmp.ne.s32.totalorder %s90, %s106
    %p108 = scmp.eq.s32.totalorder %s14, 0
    %p109 = por %p107, %p108
    %p110 = scmp.le.s32.totalorder 1, %s8
    %p111 = scmp.lt.s32.totalorder %s8, 3
    %p112 = pnand %p110, %p111
    %p113 = pneg %p112
    // Predicated region
    $region9: #{periodic_shift_forward.1} parent=5 // pred_check
      _
    $region10: #{periodic_shift_forward.1} parent=5 // pred_check_branch
      %115 = sbr.rel (%p112) target = $region12
    $region11: #{periodic_shift_forward.1} parent=5 // pred_region
      %s116 = ssub.s32 %s8, 1
    $region12: #{periodic_shift_forward.1} parent=5 // pred_fallthru
      _
    %p117 = scmp.lt.s32.totalorder %s8, 2
    // Predicated region
    $region13: #{periodic_shift_forward.1} parent=5 // pred_check
      %p118 = pneg %p117
    $region14: #{periodic_shift_forward.1} parent=5 // pred_check_branch
      %120 = sbr.rel (%p118) target = $region16
    $region15: #{periodic_shift_forward.1} parent=5 // pred_region
      // Predicated region
      $region17: #{periodic_shift_forward.1} parent=15 // pred_check
        %p121 = pneg %p40
      $region18: #{periodic_shift_forward.1} parent=15 // pred_check_branch
        %123 = sbr.rel (%p121) target = $region20
      $region19: #{periodic_shift_forward.1} parent=15 // pred_region
        %p124 = scmp.lt.s32.totalorder %s15, 1
        %s125 = scalar_select %p124, %s15, 1
        %s126 = smul.addr %s125, 2
        %s127 = smul.addr %s126, 4
        %s128 = scalar_lea.vmem %s0, %s127
      $region20: #{periodic_shift_forward.1} parent=15 // pred_fallthru
        _
      // Predicated region
      $region21: #{periodic_shift_forward.1} parent=15 // pred_check
        %p129 = pneg %p68
      $region22: #{periodic_shift_forward.1} parent=15 // pred_check_branch
        %131 = sbr.rel (%p129) target = $region24
      $region23: #{periodic_shift_forward.1} parent=15 // pred_region
        %p132 = scmp.lt.s32.totalorder %s15, 1
        %s133 = scalar_select %p132, %s15, 1
        %p134 = scmp.lt.s32.totalorder %s16, 0
        %s135 = scalar_select %p134, %s16, 0
        %s136 = smul.addr %s133, 8
        %s137 = sadd.s32 %s135, %s136
        %s138 = smul.addr %s137, 4
        %s139 = scalar_lea.vmem %s1, %s138
      $region24: #{periodic_shift_forward.1} parent=15 // pred_fallthru
        _
    $region16: #{periodic_shift_forward.1} parent=5 // pred_fallthru
      _
    %p140 = scmp.le.s32.totalorder 1, %s8
    %p141 = scmp.lt.s32.totalorder %s8, 3
    %p142 = pnand %p140, %p141
    %p143 = pneg %p142
    // Predicated region
    $region25: #{periodic_shift_forward.1} parent=5 // pred_check
      _
    $region26: #{periodic_shift_forward.1} parent=5 // pred_check_branch
      %145 = sbr.rel (%p142) target = $region28
    $region27: #{periodic_shift_forward.1} parent=5 // pred_region
      %s146 = ssub.s32 %s8, 1
      %p147 = scmp.lt.s32.totalorder %s17, 1
      %s148 = scalar_select %p147, %s17, 1
      %s149 = smul.addr %s148, 2
      %s150 = smul.addr %s149, 4
      %s151 = scalar_lea.vmem %s0, %s150
      %p152 = pneg %p46
      %p153 = pneg %p43
      %p154 = scmp.lt.s32.totalorder %s17, 1
      %s155 = scalar_select %p154, %s17, 1
      %p156 = scmp.lt.s32.totalorder %s18, 0
      %s157 = scalar_select %p156, %s18, 0
      %s158 = smul.addr %s155, 8
      %s159 = sadd.s32 %s157, %s158
      %s160 = smul.addr %s159, 4
      %s161 = scalar_lea.vmem %s1, %s160
      %p162 = pneg %p74
      %p163 = pneg %p71
      %p164 = pneg %p102
      %p165 = pneg %p99
      %p166 = scmp.lt.s32.totalorder %s17, 1
      %s167 = scalar_select %p166, %s17, 1
      %p168 = scmp.lt.s32.totalorder %s18, 0
      %s169 = scalar_select %p168, %s18, 0
      %s170 = smul.addr %s167, 4
      %s171 = sadd.s32 %s169, %s170
      %s172 = smul.addr %s171, 8
      %s173 = scalar_lea.vmem %s2, %s172
      %p174 = scmp.lt.s32.totalorder %s17, 1
      %s175 = scalar_select %p174, %s17, 1
      %s176 = smul.addr %s175, 2
      %s177 = smul.addr %s176, 4
      %s178 = scalar_lea.vmem %s0, %s177
      %p179 = scmp.lt.s32.totalorder %s17, 1
      %s180 = scalar_select %p179, %s17, 1
      %p181 = scmp.lt.s32.totalorder %s18, 0
      %s182 = scalar_select %p181, %s18, 0
      %s183 = smul.addr %s180, 8
      %s184 = sadd.s32 %s182, %s183
      %s185 = smul.addr %s184, 4
      %s186 = scalar_lea.vmem %s1, %s185
      %p187 = scmp.lt.s32.totalorder %s17, 1
      %s188 = scalar_select %p187, %s17, 1
      %p189 = scmp.lt.s32.totalorder %s18, 0
      %s190 = scalar_select %p189, %s18, 0
      %s191 = smul.addr %s188, 4
      %s192 = sadd.s32 %s190, %s191
      %s193 = smul.addr %s192, 8
      %s194 = scalar_lea.vmem %s2, %s193
      %v196 = vld [vmem:[%s178] sm:$0xf]
      %v197 = vld [vmem:[%s178 + $0x4] sm:$0xf]
      %v198 = vld [vmem:[%s186] sm:$0xf]
      %v199 = vld [vmem:[%s186 + $0x4] sm:$0xf]
      %v200 = vld [vmem:[%s186 + $0x8] sm:$0xf]
      %v201 = vld [vmem:[%s186 + $0xc] sm:$0xf]
      %v204 = vunpack.c.l.b16 %v196
      %v205 = vunpack.c.l.b16 %v197
      %v206 = vpack.c.b16 %v205, %v204
      %v211 = vunpack.c.l.b16 %v198
      %v212 = vunpack.c.l.b16 %v199
      %v213 = vunpack.c.l.b16 %v200
      %v214 = vunpack.c.l.b16 %v201
      %v215 = vpack.c.b16 %v212, %v211
      %v216 = vpack.c.b16 %v214, %v213
      %vm219 = vcmask 261120
      %v221 = vsel %vm219, %v206, 0
      %223 = vmatprep.subr.bf16.mxu0 0
      %224 = vmatpush1.bf16.msra.mxu0 0
      %225 = vmatprep.subr.bf16.mxu0 0
      %226 = vmatpush1.bf16.msra.mxu0 0
      %227 = vmatprep.subr.bf16.mxu0 0
      %228 = vmatpush1.bf16.msra.mxu0 0
      %229 = vmatprep.subr.bf16.mxu0 0
      %230 = vmatpush1.bf16.msra.mxu0 0
      %231 = vmatprep.subr.bf16.mxu0 0
      %232 = vmatpush1.bf16.msra.mxu0 0
      %233 = vmatprep.subr.bf16.mxu0 0
      %234 = vmatpush1.bf16.msra.mxu0 0
      %235 = vmatprep.subr.bf16.mxu0 0
      %236 = vmatpush1.bf16.msra.mxu0 %v216
      %237 = vmatprep.subr.bf16.mxu0 0
      %238 = vmatpush1.bf16.msra.mxu0 %v215
      %239 = vmatprep.subr.bf16.mxu0 0
      %240 = vmatpush2.bf16.msra.mxu0 0
      %241 = vmatprep.subr.bf16.mxu0 0
      %242 = vmatpush2.bf16.msra.mxu0 0
      %243 = vmatprep.subr.bf16.mxu0 0
      %244 = vmatpush2.bf16.msra.mxu0 0
      %245 = vmatprep.subr.bf16.mxu0 0
      %246 = vmatpush2.bf16.msra.mxu0 0
      %247 = vmatprep.subr.bf16.mxu0 0
      %248 = vmatpush2.bf16.msra.mxu0 0
      %249 = vmatprep.subr.bf16.mxu0 0
      %250 = vmatpush2.bf16.msra.mxu0 0
      %251 = vmatprep.subr.bf16.mxu0 0
      %252 = vmatpush2.bf16.msra.mxu0 0
      %253 = vmatprep.subr.bf16.mxu0 0
      %254 = vmatpush2.bf16.msra.mxu0 0
      %255 = vmatprep.mubr.bf16.mxu0 0
      %256 = vmatmul.mubr.bf16.gmra.mxu0 %v221
      %v257 = vpop.f32.mrf.mxu0
      %v258 = vadd.f32 0.0, %v257
      %v259 = vpop.f32.mrf.mxu0
      %v260 = vpop.f32.mrf.mxu0
      %v261 = vadd.f32 0.0, %v260
      %v262 = vpop.f32.mrf.mxu0
      %263 = vdwg.mxu0
      %264 = vst [vmem:[%s194] sm:$0xff] %v258
      %265 = vst [vmem:[%s194 + $0x8] sm:$0xff] %v261
      %s266 = scalar_lea.vmem %s186, 16
      %v267 = vld [vmem:[%s266] sm:$0xf]
      %v268 = vld [vmem:[%s266 + $0x4] sm:$0xf]
      %v269 = vld [vmem:[%s266 + $0x8] sm:$0xf]
      %v270 = vld [vmem:[%s266 + $0xc] sm:$0xf]
      %v275 = vunpack.c.l.b16 %v267
      %v276 = vunpack.c.l.b16 %v268
      %v277 = vunpack.c.l.b16 %v269
      %v278 = vunpack.c.l.b16 %v270
      %v279 = vpack.c.b16 %v276, %v275
      %v280 = vpack.c.b16 %v278, %v277
      %283 = vmatprep.subr.bf16.mxu0 0
      %284 = vmatpush1.bf16.msra.mxu0 0
      %285 = vmatprep.subr.bf16.mxu0 0
      %286 = vmatpush1.bf16.msra.mxu0 0
      %287 = vmatprep.subr.bf16.mxu0 0
      %288 = vmatpush1.bf16.msra.mxu0 0
      %289 = vmatprep.subr.bf16.mxu0 0
      %290 = vmatpush1.bf16.msra.mxu0 0
      %291 = vmatprep.subr.bf16.mxu0 0
      %292 = vmatpush1.bf16.msra.mxu0 0
      %293 = vmatprep.subr.bf16.mxu0 0
      %294 = vmatpush1.bf16.msra.mxu0 0
      %295 = vmatprep.subr.bf16.mxu0 0
      %296 = vmatpush1.bf16.msra.mxu0 %v280
      %297 = vmatprep.subr.bf16.mxu0 0
      %298 = vmatpush1.bf16.msra.mxu0 %v279
      %299 = vmatprep.subr.bf16.mxu0 0
      %300 = vmatpush2.bf16.msra.mxu0 0
      %301 = vmatprep.subr.bf16.mxu0 0
      %302 = vmatpush2.bf16.msra.mxu0 0
      %303 = vmatprep.subr.bf16.mxu0 0
      %304 = vmatpush2.bf16.msra.mxu0 0
      %305 = vmatprep.subr.bf16.mxu0 0
      %306 = vmatpush2.bf16.msra.mxu0 0
      %307 = vmatprep.subr.bf16.mxu0 0
      %308 = vmatpush2.bf16.msra.mxu0 0
      %309 = vmatprep.subr.bf16.mxu0 0
      %310 = vmatpush2.bf16.msra.mxu0 0
      %311 = vmatprep.subr.bf16.mxu0 0
      %312 = vmatpush2.bf16.msra.mxu0 0
      %313 = vmatprep.subr.bf16.mxu0 0
      %314 = vmatpush2.bf16.msra.mxu0 0
      %315 = vmatprep.mubr.bf16.mxu0 0
      %316 = vmatmul.mubr.bf16.gmra.mxu0 %v221
      %v317 = vpop.f32.mrf.mxu0
      %v318 = vadd.f32 0.0, %v317
      %v319 = vpop.f32.mrf.mxu0
      %v320 = vpop.f32.mrf.mxu0
      %v321 = vadd.f32 0.0, %v320
      %v322 = vpop.f32.mrf.mxu0
      %323 = vdwg.mxu0
      %s324 = scalar_lea.vmem %s194, 16
      %325 = vst [vmem:[%s324] sm:$0xff] %v318
      %326 = vst [vmem:[%s324 + $0x8] sm:$0xff] %v321
      %p327 = scmp.lt.s32.totalorder %s17, 1
      %s328 = scalar_select %p327, %s17, 1
      %p329 = scmp.lt.s32.totalorder %s18, 0
      %s330 = scalar_select %p329, %s18, 0
      %s331 = smul.addr %s328, 4
      %s332 = sadd.s32 %s330, %s331
      %s333 = smul.addr %s332, 8
      %s334 = scalar_lea.vmem %s2, %s333
      // Predicated region
      $region29: #{periodic_shift_forward.1} parent=27 // pred_check
        %p335 = pneg %p99
      $region30: #{periodic_shift_forward.1} parent=27 // pred_check_branch
        %337 = sbr.rel (%p335) target = $region32
      $region31: #{periodic_shift_forward.1} parent=27 // pred_region
        _
      $region32: #{periodic_shift_forward.1} parent=27 // pred_fallthru
        _
    $region28: #{periodic_shift_forward.1} parent=5 // pred_fallthru
      _
    %p338 = scmp.le.s32.totalorder 2, %s8
    // Predicated region
    $region33: #{periodic_shift_forward.1} parent=5 // pred_check
      %p339 = pneg %p338
    $region34: #{periodic_shift_forward.1} parent=5 // pred_check_branch
      %341 = sbr.rel (%p339) target = $region36
    $region35: #{periodic_shift_forward.1} parent=5 // pred_region
      %s342 = ssub.s32 %s8, 2
      // Predicated region
      $region37: #{periodic_shift_forward.1} parent=35 // pred_check
        %p343 = pneg %p105
      $region38: #{periodic_shift_forward.1} parent=35 // pred_check_branch
        %345 = sbr.rel (%p343) target = $region40
      $region39: #{periodic_shift_forward.1} parent=35 // pred_region
        %p346 = scmp.lt.s32.totalorder %s19, 1
        %s347 = scalar_select %p346, %s19, 1
        %p348 = scmp.lt.s32.totalorder %s20, 0
        %s349 = scalar_select %p348, %s20, 0
        %s350 = smul.addr %s347, 4
        %s351 = sadd.s32 %s349, %s350
        %s352 = smul.addr %s351, 8
        %s353 = scalar_lea.vmem %s2, %s352
      $region40: #{periodic_shift_forward.1} parent=35 // pred_fallthru
        _
    $region36: #{periodic_shift_forward.1} parent=5 // pred_fallthru
      _
  $region6: #{periodic_shift_forward.1} parent=0 // loop_footer
    %s12 = sadd.s32 1, %s8
  $region7: #{periodic_shift_forward.1} parent=0 // loop_footer_branch
    %7 = sbr.rel target = $region3
  $region8: #{periodic_shift_forward.1} parent=0 // loop_exit
    _

</llo_original>
